<compile_context>
chip_gen: v5e
topology: v5e:2x2
jax: 0.10.0
libtpu: 0.0.40
codegen_flags: <defaults>
</compile_context>

<pallas_src>
import jax
import jax.numpy as jnp
from jax.experimental import pallas as pl
from jax.experimental.pallas import tpu as pltpu


LAYER_DIMS = [(784, 128), (128, 64), (64, 12), (12, 64), (64, 128), (128, 784)]
LANE = 128
D_IN = 784
# Per-row MXU FLOPs with the 12-wide bottleneck padded to 128 lanes.
_FLOPS_PER_ROW = 2 * (784 * 128 + 128 * 64 + 64 * 128 + 128 * 64 + 64 * 128 + 128 * 784)


def _round_up(x, m):
    return ((x + m - 1) // m) * m


# ---------------------------------------------------------------------------
# Kernel: 6 matmuls + bias + activation, fully fused.  bf16 MXU operands,
# f32 accumulation, bf16 epilogues.
# ---------------------------------------------------------------------------
def _autoencoder_kernel(
    x_ref,
    w1_ref, b1_ref,
    w2_ref, b2_ref,
    w3_ref, b3_ref,
    w4_ref, b4_ref,
    w5_ref, b5_ref,
    w6_ref, b6_ref,
    o_ref,
):
    def linear(h, w_ref, b_ref):
        # bf16 x bf16 -> f32 accumulate on the MXU, f32 bias add on the VPU.
        return jnp.dot(h, w_ref[...], preferred_element_type=jnp.float32) + b_ref[...]

    def relu_bf16(h):
        # ReLU in f32, then narrow to bf16 for the next MXU pass.
        return jnp.maximum(h, 0.0).astype(jnp.bfloat16)

    # In-kernel cast: accept the caller's dtype, no separate HBM cast pass.
    h = x_ref[...].astype(jnp.bfloat16)              # (bt, 784) bf16
    # Encoder
    h = relu_bf16(linear(h, w1_ref, b1_ref))         # (bt, 128)
    h = relu_bf16(linear(h, w2_ref, b2_ref))         # (bt, 64)
    h = relu_bf16(linear(h, w3_ref, b3_ref))         # (bt, 128)  (12 padded->128)
    # Decoder
    h = relu_bf16(linear(h, w4_ref, b4_ref))         # (bt, 64)
    h = relu_bf16(linear(h, w5_ref, b5_ref))         # (bt, 128)
    # Final layer: f32 accumulation, bf16 tanh epilogue (halves the largest
    # live temporary; output is bf16 anyway, ~1 ulp accuracy impact).
    h = jnp.tanh(linear(h, w6_ref, b6_ref).astype(jnp.bfloat16))   # (bt, 784)
    o_ref[...] = h.astype(o_ref.dtype)


def _pack_params(params):
    """Cast weights to bf16 and lane-pad the 12-wide bottleneck to 128.

    Returns a flat [w1, b1, ..., w6, b6] list.  Padding is exact: padded
    output lanes of layer 3 are 0 (zero weight cols + zero bias), survive the
    ReLU as 0, and meet zero rows of layer 4's padded weight.
    """
    flat = []
    for idx, (w, b) in enumerate(params):
        w = jnp.asarray(w, jnp.float32)
        b = jnp.asarray(b, jnp.float32).reshape(1, -1)
        if idx == 2:  # 64 -> 12 : pad output features 12 -> 128 lanes
            w = jnp.pad(w, ((0, 0), (0, LANE - w.shape[1])))
            b = jnp.pad(b, ((0, 0), (0, LANE - b.shape[1])))
        if idx == 3:  # 12 -> 64 : pad input features 12 -> 128 (zero rows)
            w = jnp.pad(w, ((0, LANE - w.shape[0]), (0, 0)))
        flat.append(w.astype(jnp.bfloat16))  # weights streamed/stored in bf16
        flat.append(b)                       # biases stay f32 (tiny, exact add)
    return flat


def _vmem_cap_bytes():
    """Generation-aware VMEM ceiling (minus compiler headroom)."""
    try:
        cap = int(pltpu.get_tpu_info().vmem_capacity_bytes)
    except Exception:
        cap = 64 * 2**20  # conservative: v7x per-TensorCore VMEM
    return max(16 * 2**20, cap - 8 * 2**20)


def _default_batch_tile(B):
    if B <= 32:
        return max(8, _round_up(B, 8))
    # >= 4 grid steps (DMA/compute overlap + megacore sharding on v7x), tile a
    # multiple of 8, cap at 1024 rows: keeps the ~0.35 us fixed per-step
    # overhead <~10% of the step while fitting v7x's 64 MiB VMEM with f32 in.
    return int(min(1024, _round_up(pl.cdiv(B, 4), 8)))


def autoencoder_forward(x, params, *, batch_tile=None, out_dtype=jnp.bfloat16):
    """Fused autoencoder forward pass.

    x:      (B, 784) float array (any float dtype; cast to bf16 in-kernel)
    params: list of 6 (W, b) pairs with W shape (in, out), b shape (1, out)
    """
    B, d_in = x.shape
    assert d_in == D_IN, "expected flattened 28x28 input"

    if batch_tile is None:
        batch_tile = _default_batch_tile(B)
    assert batch_tile >= 8 and batch_tile % 8 == 0, "batch_tile must be a multiple of 8"

    flat_params = _pack_params(params)

    # x / out tiled over the batch (partial last block handled by Pallas);
    # weights/biases use full-array blocks with a constant index_map, so they
    # are fetched once and stay resident in VMEM across the grid.  (A
    # pl.Buffered(1) hint on the params would shave a redundant second buffer,
    # but the whole parameter set is ~0.5 MiB, so it is not worth the risk.)
    grid = (pl.cdiv(B, batch_tile),)
    x_spec = pl.BlockSpec((batch_tile, D_IN), lambda i: (i, 0))
    param_specs = [pl.BlockSpec(p.shape, lambda i: (0, 0)) for p in flat_params]
    out_spec = pl.BlockSpec((batch_tile, D_IN), lambda i: (i, 0))

    in_itemsize = jnp.dtype(x.dtype).itemsize
    out_itemsize = jnp.dtype(out_dtype).itemsize
    param_bytes = sum(int(p.size) * p.dtype.itemsize for p in flat_params)

    # Explicit VMEM budget: double-buffered in/out tiles + resident weights
    # (counted double-buffered, worst case) + in-kernel intermediates + slack,
    # clamped to the hardware capacity (64 MiB on v7x, 128 MiB on v5e/v6e).
    io_bytes = 2 * batch_tile * D_IN * (in_itemsize + out_itemsize)
    interm_bytes = batch_tile * D_IN * (4 + 2) + 4 * batch_tile * LANE * 4
    vmem_limit = int(
        min(
            _vmem_cap_bytes(),
            max(32 * 2**20, io_bytes + 2 * param_bytes + interm_bytes + 8 * 2**20),
        )
    )

    cost = pl.CostEstimate(
        flops=int(B) * _FLOPS_PER_ROW,
        transcendentals=int(B) * D_IN,
        bytes_accessed=int(B) * D_IN * (in_itemsize + out_itemsize) + param_bytes,
    )

    # TODO(synk): on v7x, pltpu.CORE_PARALLEL on the batch axis would guarantee
    # both TensorCores split the grid; kept "parallel" for cross-gen safety.
    return pl.pallas_call(
        _autoencoder_kernel,
        out_shape=jax.ShapeDtypeStruct((B, D_IN), out_dtype),
        grid_spec=pltpu.PrefetchScalarGridSpec(
            num_scalar_prefetch=0,
            grid=grid,
            in_specs=[x_spec] + param_specs,
            out_specs=out_spec,
        ),
        compiler_params=pltpu.CompilerParams(
            dimension_semantics=("parallel",),
            vmem_limit_bytes=vmem_limit,
        ),
        cost_estimate=cost,
    )(x, *flat_params)


# ---------------------------------------------------------------------------
# Deterministic parameter init (mimics PyTorch nn.Linear default:
# U(-1/sqrt(fan_in), 1/sqrt(fan_in)) for both weight and bias).
# ---------------------------------------------------------------------------
def init_params(key):
    params = []
    for fan_in, fan_out in LAYER_DIMS:
        key, kw, kb = jax.random.split(key, 3)
        bound = 1.0 / jnp.sqrt(jnp.float32(fan_in))
        # Stored as (in, out) == PyTorch W.T so the kernel does x @ W + b.
        w = jax.random.uniform(kw, (fan_in, fan_out), jnp.float32, -bound, bound)
        b = jax.random.uniform(kb, (1, fan_out), jnp.float32, -bound, bound)
        params.append((w, b))
    return params


def reference_forward(x, params, *, use_bf16=True):
    """Plain-JAX reference.  With use_bf16=True it mirrors the kernel's
    mixed-precision scheme (bf16 operands, f32 accumulation, bf16 epilogues)."""
    h = x.astype(jnp.bfloat16) if use_bf16 else x
    for idx, (w, b) in enumerate(params):
        wq = w.astype(jnp.bfloat16) if use_bf16 else w
        h = jnp.dot(h, wq, preferred_element_type=jnp.float32) + b
        if idx < len(params) - 1:
            h = jnp.maximum(h, 0.0)
            if use_bf16:
                h = h.astype(jnp.bfloat16)
        else:
            if use_bf16:
                h = h.astype(jnp.bfloat16)
            h = jnp.tanh(h)
    return h


if __name__ == "__main__":
    key = jax.random.PRNGKey(0)
    key_p, key_x1, key_x2 = jax.random.split(key, 3)

    params = init_params(key_p)

    # Case 1: small aligned batch, single grid step, default tiling.
    B1 = 8
    x1 = jax.random.normal(key_x1, (B1, 784), jnp.float32)
    out1 = jax.block_until_ready(autoencoder_forward(x1, params))
    ref1 = reference_forward(x1, params, use_bf16=True)
    assert out1.shape == (B1, 784)
    err1 = float(jnp.max(jnp.abs(out1.astype(jnp.float32) - ref1.astype(jnp.float32))))
    assert err1 < 2e-2, err1

    # Case 2: ragged batch + multi-step grid (exercises pipelining and the
    # masked partial last block) with an explicit tile.
    B2 = 20
    x2 = jax.random.normal(key_x2, (B2, 784), jnp.float32)
    out2 = jax.block_until_ready(autoencoder_forward(x2, params, batch_tile=8))
    ref2 = reference_forward(x2, params, use_bf16=True)
    assert out2.shape == (B2, 784)
    err2 = float(jnp.max(jnp.abs(out2.astype(jnp.float32) - ref2.astype(jnp.float32))))
    assert err2 < 2e-2, err2

    print("KERNEL_OK")
</pallas_src>

<mosaic_0001>
module attributes {stable_mosaic.version = 11 : i64} {
  func.func @_autoencoder_kernel(%arg0: i32, %arg1: memref<8x784xf32, #tpu.memory_space<vmem>>, %arg2: memref<784x128xbf16, #tpu.memory_space<vmem>>, %arg3: memref<1x128xf32, #tpu.memory_space<vmem>>, %arg4: memref<128x64xbf16, #tpu.memory_space<vmem>>, %arg5: memref<1x64xf32, #tpu.memory_space<vmem>>, %arg6: memref<64x128xbf16, #tpu.memory_space<vmem>>, %arg7: memref<1x128xf32, #tpu.memory_space<vmem>>, %arg8: memref<128x64xbf16, #tpu.memory_space<vmem>>, %arg9: memref<1x64xf32, #tpu.memory_space<vmem>>, %arg10: memref<64x128xbf16, #tpu.memory_space<vmem>>, %arg11: memref<1x128xf32, #tpu.memory_space<vmem>>, %arg12: memref<128x784xbf16, #tpu.memory_space<vmem>>, %arg13: memref<1x784xf32, #tpu.memory_space<vmem>>, %arg14: memref<8x784xbf16, #tpu.memory_space<vmem>>) attributes {dimension_semantics = [#tpu.dimension_semantics<parallel>], iteration_bounds = array<i64: 1>, scalar_prefetch = 0 : i64, scratch_operands = 0 : i64, tpu.core_type = #tpu.core_type<tc>, window_params = [{transform_indices = @transform_0, window_bounds = array<i64: 8, 784>}, {pipeline_mode = #tpu.pipeline_mode<synchronous>, transform_indices = @transform_1, window_bounds = array<i64: 784, 128>}, {pipeline_mode = #tpu.pipeline_mode<synchronous>, transform_indices = @transform_2, window_bounds = array<i64: 1, 128>}, {pipeline_mode = #tpu.pipeline_mode<synchronous>, transform_indices = @transform_3, window_bounds = array<i64: 128, 64>}, {pipeline_mode = #tpu.pipeline_mode<synchronous>, transform_indices = @transform_4, window_bounds = array<i64: 1, 64>}, {pipeline_mode = #tpu.pipeline_mode<synchronous>, transform_indices = @transform_5, window_bounds = array<i64: 64, 128>}, {pipeline_mode = #tpu.pipeline_mode<synchronous>, transform_indices = @transform_6, window_bounds = array<i64: 1, 128>}, {pipeline_mode = #tpu.pipeline_mode<synchronous>, transform_indices = @transform_7, window_bounds = array<i64: 128, 64>}, {pipeline_mode = #tpu.pipeline_mode<synchronous>, transform_indices = @transform_8, window_bounds = array<i64: 1, 64>}, {pipeline_mode = #tpu.pipeline_mode<synchronous>, transform_indices = @transform_9, window_bounds = array<i64: 64, 128>}, {pipeline_mode = #tpu.pipeline_mode<synchronous>, transform_indices = @transform_10, window_bounds = array<i64: 1, 128>}, {pipeline_mode = #tpu.pipeline_mode<synchronous>, transform_indices = @transform_11, window_bounds = array<i64: 128, 784>}, {pipeline_mode = #tpu.pipeline_mode<synchronous>, transform_indices = @transform_12, window_bounds = array<i64: 1, 784>}, {transform_indices = @transform_13, window_bounds = array<i64: 8, 784>}]} {
    %c0 = arith.constant 0 : index
    %c0_0 = arith.constant 0 : index
    %0 = vector.load %arg1[%c0, %c0_0] : memref<8x784xf32, #tpu.memory_space<vmem>>, vector<8x784xf32>
    %1 = arith.truncf %0 : vector<8x784xf32> to vector<8x784xbf16>
    %c0_1 = arith.constant 0 : index
    %c0_2 = arith.constant 0 : index
    %2 = vector.load %arg2[%c0_1, %c0_2] : memref<784x128xbf16, #tpu.memory_space<vmem>>, vector<784x128xbf16>
    %cst = arith.constant dense<0.000000e+00> : vector<8x128xf32>
    %3 = tpu.matmul %1, %2, %cst {dimension_numbers = #tpu.dot_dimension_numbers<[1], [0], [0], [1], [0, 0, 1, 1], [], []>} : vector<8x784xbf16>, vector<784x128xbf16>, vector<8x128xf32> -> vector<8x128xf32>
    %c0_3 = arith.constant 0 : index
    %c0_4 = arith.constant 0 : index
    %4 = vector.load %arg3[%c0_3, %c0_4] : memref<1x128xf32, #tpu.memory_space<vmem>>, vector<1x128xf32>
    %5 = vector.broadcast %4 : vector<1x128xf32> to vector<8x128xf32>
    %6 = arith.addf %3, %5 : vector<8x128xf32>
    %cst_5 = arith.constant 0.000000e+00 : f32
    %7 = vector.broadcast %cst_5 : f32 to vector<8x128xf32>
    %8 = arith.maximumf %6, %7 : vector<8x128xf32>
    %9 = arith.truncf %8 : vector<8x128xf32> to vector<8x128xbf16>
    %c0_6 = arith.constant 0 : index
    %c0_7 = arith.constant 0 : index
    %10 = vector.load %arg4[%c0_6, %c0_7] : memref<128x64xbf16, #tpu.memory_space<vmem>>, vector<128x64xbf16>
    %cst_8 = arith.constant dense<0.000000e+00> : vector<8x64xf32>
    %11 = tpu.matmul %9, %10, %cst_8 {dimension_numbers = #tpu.dot_dimension_numbers<[1], [0], [0], [1], [0, 0, 1, 1], [], []>} : vector<8x128xbf16>, vector<128x64xbf16>, vector<8x64xf32> -> vector<8x64xf32>
    %c0_9 = arith.constant 0 : index
    %c0_10 = arith.constant 0 : index
    %12 = vector.load %arg5[%c0_9, %c0_10] : memref<1x64xf32, #tpu.memory_space<vmem>>, vector<1x64xf32>
    %13 = vector.broadcast %12 : vector<1x64xf32> to vector<8x64xf32>
    %14 = arith.addf %11, %13 : vector<8x64xf32>
    %cst_11 = arith.constant 0.000000e+00 : f32
    %15 = vector.broadcast %cst_11 : f32 to vector<8x64xf32>
    %16 = arith.maximumf %14, %15 : vector<8x64xf32>
    %17 = arith.truncf %16 : vector<8x64xf32> to vector<8x64xbf16>
    %c0_12 = arith.constant 0 : index
    %c0_13 = arith.constant 0 : index
    %18 = vector.load %arg6[%c0_12, %c0_13] : memref<64x128xbf16, #tpu.memory_space<vmem>>, vector<64x128xbf16>
    %cst_14 = arith.constant dense<0.000000e+00> : vector<8x128xf32>
    %19 = tpu.matmul %17, %18, %cst_14 {dimension_numbers = #tpu.dot_dimension_numbers<[1], [0], [0], [1], [0, 0, 1, 1], [], []>} : vector<8x64xbf16>, vector<64x128xbf16>, vector<8x128xf32> -> vector<8x128xf32>
    %c0_15 = arith.constant 0 : index
    %c0_16 = arith.constant 0 : index
    %20 = vector.load %arg7[%c0_15, %c0_16] : memref<1x128xf32, #tpu.memory_space<vmem>>, vector<1x128xf32>
    %21 = vector.broadcast %20 : vector<1x128xf32> to vector<8x128xf32>
    %22 = arith.addf %19, %21 : vector<8x128xf32>
    %cst_17 = arith.constant 0.000000e+00 : f32
    %23 = vector.broadcast %cst_17 : f32 to vector<8x128xf32>
    %24 = arith.maximumf %22, %23 : vector<8x128xf32>
    %25 = arith.truncf %24 : vector<8x128xf32> to vector<8x128xbf16>
    %c0_18 = arith.constant 0 : index
    %c0_19 = arith.constant 0 : index
    %26 = vector.load %arg8[%c0_18, %c0_19] : memref<128x64xbf16, #tpu.memory_space<vmem>>, vector<128x64xbf16>
    %cst_20 = arith.constant dense<0.000000e+00> : vector<8x64xf32>
    %27 = tpu.matmul %25, %26, %cst_20 {dimension_numbers = #tpu.dot_dimension_numbers<[1], [0], [0], [1], [0, 0, 1, 1], [], []>} : vector<8x128xbf16>, vector<128x64xbf16>, vector<8x64xf32> -> vector<8x64xf32>
    %c0_21 = arith.constant 0 : index
    %c0_22 = arith.constant 0 : index
    %28 = vector.load %arg9[%c0_21, %c0_22] : memref<1x64xf32, #tpu.memory_space<vmem>>, vector<1x64xf32>
    %29 = vector.broadcast %28 : vector<1x64xf32> to vector<8x64xf32>
    %30 = arith.addf %27, %29 : vector<8x64xf32>
    %cst_23 = arith.constant 0.000000e+00 : f32
    %31 = vector.broadcast %cst_23 : f32 to vector<8x64xf32>
    %32 = arith.maximumf %30, %31 : vector<8x64xf32>
    %33 = arith.truncf %32 : vector<8x64xf32> to vector<8x64xbf16>
    %c0_24 = arith.constant 0 : index
    %c0_25 = arith.constant 0 : index
    %34 = vector.load %arg10[%c0_24, %c0_25] : memref<64x128xbf16, #tpu.memory_space<vmem>>, vector<64x128xbf16>
    %cst_26 = arith.constant dense<0.000000e+00> : vector<8x128xf32>
    %35 = tpu.matmul %33, %34, %cst_26 {dimension_numbers = #tpu.dot_dimension_numbers<[1], [0], [0], [1], [0, 0, 1, 1], [], []>} : vector<8x64xbf16>, vector<64x128xbf16>, vector<8x128xf32> -> vector<8x128xf32>
    %c0_27 = arith.constant 0 : index
    %c0_28 = arith.constant 0 : index
    %36 = vector.load %arg11[%c0_27, %c0_28] : memref<1x128xf32, #tpu.memory_space<vmem>>, vector<1x128xf32>
    %37 = vector.broadcast %36 : vector<1x128xf32> to vector<8x128xf32>
    %38 = arith.addf %35, %37 : vector<8x128xf32>
    %cst_29 = arith.constant 0.000000e+00 : f32
    %39 = vector.broadcast %cst_29 : f32 to vector<8x128xf32>
    %40 = arith.maximumf %38, %39 : vector<8x128xf32>
    %41 = arith.truncf %40 : vector<8x128xf32> to vector<8x128xbf16>
    %c0_30 = arith.constant 0 : index
    %c0_31 = arith.constant 0 : index
    %42 = vector.load %arg12[%c0_30, %c0_31] : memref<128x784xbf16, #tpu.memory_space<vmem>>, vector<128x784xbf16>
    %cst_32 = arith.constant dense<0.000000e+00> : vector<8x784xf32>
    %43 = tpu.matmul %41, %42, %cst_32 {dimension_numbers = #tpu.dot_dimension_numbers<[1], [0], [0], [1], [0, 0, 1, 1], [], []>} : vector<8x128xbf16>, vector<128x784xbf16>, vector<8x784xf32> -> vector<8x784xf32>
    %c0_33 = arith.constant 0 : index
    %c0_34 = arith.constant 0 : index
    %44 = vector.load %arg13[%c0_33, %c0_34] : memref<1x784xf32, #tpu.memory_space<vmem>>, vector<1x784xf32>
    %45 = vector.broadcast %44 : vector<1x784xf32> to vector<8x784xf32>
    %46 = arith.addf %43, %45 : vector<8x784xf32>
    %47 = arith.truncf %46 : vector<8x784xf32> to vector<8x784xbf16>
    %48 = math.tanh %47 : vector<8x784xbf16>
    %c0_35 = arith.constant 0 : index
    %c0_36 = arith.constant 0 : index
    %49 = vector.load %arg14[%c0_35, %c0_36] : memref<8x784xbf16, #tpu.memory_space<vmem>>, vector<8x784xbf16>
    tpu.vector_store %arg14[%c0_35, %c0_36], %48 {strides = array<i32>} : memref<8x784xbf16, #tpu.memory_space<vmem>>, vector<8x784xbf16>,
    return
  }
  func.func @transform_0(%arg0: i32) -> (i32, i32) {
    %c0_i32 = arith.constant 0 : i32
    %c0_i32_0 = arith.constant 0 : i32
    return %arg0, %c0_i32 : i32, i32
  }
  func.func @transform_1(%arg0: i32) -> (i32, i32) {
    %c0_i32 = arith.constant 0 : i32
    %c0_i32_0 = arith.constant 0 : i32
    %c0_i32_1 = arith.constant 0 : i32
    return %c0_i32, %c0_i32_0 : i32, i32
  }
  func.func @transform_2(%arg0: i32) -> (i32, i32) {
    %c0_i32 = arith.constant 0 : i32
    %c0_i32_0 = arith.constant 0 : i32
    %c0_i32_1 = arith.constant 0 : i32
    return %c0_i32, %c0_i32_0 : i32, i32
  }
  func.func @transform_3(%arg0: i32) -> (i32, i32) {
    %c0_i32 = arith.constant 0 : i32
    %c0_i32_0 = arith.constant 0 : i32
    %c0_i32_1 = arith.constant 0 : i32
    return %c0_i32, %c0_i32_0 : i32, i32
  }
  func.func @transform_4(%arg0: i32) -> (i32, i32) {
    %c0_i32 = arith.constant 0 : i32
    %c0_i32_0 = arith.constant 0 : i32
    %c0_i32_1 = arith.constant 0 : i32
    return %c0_i32, %c0_i32_0 : i32, i32
  }
  func.func @transform_5(%arg0: i32) -> (i32, i32) {
    %c0_i32 = arith.constant 0 : i32
    %c0_i32_0 = arith.constant 0 : i32
    %c0_i32_1 = arith.constant 0 : i32
    return %c0_i32, %c0_i32_0 : i32, i32
  }
  func.func @transform_6(%arg0: i32) -> (i32, i32) {
    %c0_i32 = arith.constant 0 : i32
    %c0_i32_0 = arith.constant 0 : i32
    %c0_i32_1 = arith.constant 0 : i32
    return %c0_i32, %c0_i32_0 : i32, i32
  }
  func.func @transform_7(%arg0: i32) -> (i32, i32) {
    %c0_i32 = arith.constant 0 : i32
    %c0_i32_0 = arith.constant 0 : i32
    %c0_i32_1 = arith.constant 0 : i32
    return %c0_i32, %c0_i32_0 : i32, i32
  }
  func.func @transform_8(%arg0: i32) -> (i32, i32) {
    %c0_i32 = arith.constant 0 : i32
    %c0_i32_0 = arith.constant 0 : i32
    %c0_i32_1 = arith.constant 0 : i32
    return %c0_i32, %c0_i32_0 : i32, i32
  }
  func.func @transform_9(%arg0: i32) -> (i32, i32) {
    %c0_i32 = arith.constant 0 : i32
    %c0_i32_0 = arith.constant 0 : i32
    %c0_i32_1 = arith.constant 0 : i32
    return %c0_i32, %c0_i32_0 : i32, i32
  }
  func.func @transform_10(%arg0: i32) -> (i32, i32) {
    %c0_i32 = arith.constant 0 : i32
    %c0_i32_0 = arith.constant 0 : i32
    %c0_i32_1 = arith.constant 0 : i32
    return %c0_i32, %c0_i32_0 : i32, i32
  }
  func.func @transform_11(%arg0: i32) -> (i32, i32) {
    %c0_i32 = arith.constant 0 : i32
    %c0_i32_0 = arith.constant 0 : i32
    %c0_i32_1 = arith.constant 0 : i32
    return %c0_i32, %c0_i32_0 : i32, i32
  }
  func.func @transform_12(%arg0: i32) -> (i32, i32) {
    %c0_i32 = arith.constant 0 : i32
    %c0_i32_0 = arith.constant 0 : i32
    %c0_i32_1 = arith.constant 0 : i32
    return %c0_i32, %c0_i32_0 : i32, i32
  }
  func.func @transform_13(%arg0: i32) -> (i32, i32) {
    %c0_i32 = arith.constant 0 : i32
    %c0_i32_0 = arith.constant 0 : i32
    return %arg0, %c0_i32 : i32, i32
  }
}

</mosaic_0001>

<llo_original>
// kernel: tpu_custom_call.1
$region0: #{tpu_custom_call.1}
  #allocation0 [shape = 'u32[]', space=smem, size = 0x4, offset = 0x4, fixed_abs, tag = 'smem constant byte address 0x4 - core index']
  #allocation1 [shape = 'u32[72,128]{1,0:T(1,128)}', space=vmem, size = 0x9000, scoped, tag = 'internal scratch']
  %s0 = inlined_call_operand.vmem [shape: f32[8,784], index: 0, kind: input, shape index: {}]
  %s1 = inlined_call_operand.vmem [shape: bf16[784,128], index: 1, kind: input, shape index: {}]
  %s2 = inlined_call_operand.vmem [shape: f32[1,128], index: 2, kind: input, shape index: {}]
  %s3 = inlined_call_operand.vmem [shape: bf16[128,64], index: 3, kind: input, shape index: {}]
  %s4 = inlined_call_operand.vmem [shape: f32[1,64], index: 4, kind: input, shape index: {}]
  %s5 = inlined_call_operand.vmem [shape: bf16[64,128], index: 5, kind: input, shape index: {}]
  %s6 = inlined_call_operand.vmem [shape: f32[1,128], index: 6, kind: input, shape index: {}]
  %s7 = inlined_call_operand.vmem [shape: bf16[128,64], index: 7, kind: input, shape index: {}]
  %s8 = inlined_call_operand.vmem [shape: f32[1,64], index: 8, kind: input, shape index: {}]
  %s9 = inlined_call_operand.vmem [shape: bf16[64,128], index: 9, kind: input, shape index: {}]
  %s10 = inlined_call_operand.vmem [shape: f32[1,128], index: 10, kind: input, shape index: {}]
  %s11 = inlined_call_operand.vmem [shape: bf16[128,784], index: 11, kind: input, shape index: {}]
  %s12 = inlined_call_operand.vmem [shape: f32[1,784], index: 12, kind: input, shape index: {}]
  %s13 = inlined_call_operand.hbm [shape: bf16[8,784], index: 13, kind: output, shape index: {}]
  %s14 = sld [smem:[#allocation0]]
  $region62: #{tpu_custom_call.1} parent=0
    _
  %s16 = ssub.s32 1, %s14
  %s17 = scalar_select 0, %s16, %s14
  $region1: #{tpu_custom_call.1} parent=0
    #allocation2 [shape = 'u8[14336]{0}', space=vmem, size = 0x3800, scoped, tag = 'output window, operand 0, single buffered']
    #allocation3 [shape = 's32[1]{0}', space=sflag, size = 0x4, scoped, tag = 'scoped memory for tpu_custom_call.1']
    %18 = vsyncpa [#allocation3], 0
    // Predicated region
    $region2: #{tpu_custom_call.1} parent=1 // pred_check
      _
    $region3: #{tpu_custom_call.1} parent=1 // pred_check_branch
      %20 = sbr.rel (0) target = $region5
    $region4: #{tpu_custom_call.1} parent=1 // pred_region
      _
    $region5: #{tpu_custom_call.1} parent=1 // pred_fallthru
      _
    // Predicated region
    $region6: #{tpu_custom_call.1} parent=1 // pred_check
      _
    $region7: #{tpu_custom_call.1} parent=1 // pred_check_branch
      %22 = sbr.rel (0) target = $region9
    $region8: #{tpu_custom_call.1} parent=1 // pred_region
      _
    $region9: #{tpu_custom_call.1} parent=1 // pred_fallthru
      _
    // Predicated region
    $region10: #{tpu_custom_call.1} parent=1 // pred_check
      _
    $region11: #{tpu_custom_call.1} parent=1 // pred_check_branch
      %24 = sbr.rel (0) target = $region13
    $region12: #{tpu_custom_call.1} parent=1 // pred_region
      _
    $region13: #{tpu_custom_call.1} parent=1 // pred_fallthru
      _
    // Predicated region
    $region14: #{tpu_custom_call.1} parent=1 // pred_check
      _
    $region15: #{tpu_custom_call.1} parent=1 // pred_check_branch
      %26 = sbr.rel (0) target = $region17
    $region16: #{tpu_custom_call.1} parent=1 // pred_region
      _
    $region17: #{tpu_custom_call.1} parent=1 // pred_fallthru
      _
    // Predicated region
    $region18: #{tpu_custom_call.1} parent=1 // pred_check
      _
    $region19: #{tpu_custom_call.1} parent=1 // pred_check_branch
      %28 = sbr.rel (0) target = $region21
    $region20: #{tpu_custom_call.1} parent=1 // pred_region
      _
    $region21: #{tpu_custom_call.1} parent=1 // pred_fallthru
      _
    // Predicated region
    $region22: #{tpu_custom_call.1} parent=1 // pred_check
      _
    $region23: #{tpu_custom_call.1} parent=1 // pred_check_branch
      %30 = sbr.rel (0) target = $region25
    $region24: #{tpu_custom_call.1} parent=1 // pred_region
      _
    $region25: #{tpu_custom_call.1} parent=1 // pred_fallthru
      _
    // Predicated region
    $region26: #{tpu_custom_call.1} parent=1 // pred_check
      _
    $region27: #{tpu_custom_call.1} parent=1 // pred_check_branch
      %32 = sbr.rel (0) target = $region29
    $region28: #{tpu_custom_call.1} parent=1 // pred_region
      _
    $region29: #{tpu_custom_call.1} parent=1 // pred_fallthru
      _
    // Predicated region
    $region30: #{tpu_custom_call.1} parent=1 // pred_check
      _
    $region31: #{tpu_custom_call.1} parent=1 // pred_check_branch
      %34 = sbr.rel (0) target = $region33
    $region32: #{tpu_custom_call.1} parent=1 // pred_region
      _
    $region33: #{tpu_custom_call.1} parent=1 // pred_fallthru
      _
    // Predicated region
    $region34: #{tpu_custom_call.1} parent=1 // pred_check
      _
    $region35: #{tpu_custom_call.1} parent=1 // pred_check_branch
      %36 = sbr.rel (0) target = $region37
    $region36: #{tpu_custom_call.1} parent=1 // pred_region
      _
    $region37: #{tpu_custom_call.1} parent=1 // pred_fallthru
      _
    // Predicated region
    $region38: #{tpu_custom_call.1} parent=1 // pred_check
      _
    $region39: #{tpu_custom_call.1} parent=1 // pred_check_branch
      %38 = sbr.rel (0) target = $region41
    $region40: #{tpu_custom_call.1} parent=1 // pred_region
      _
    $region41: #{tpu_custom_call.1} parent=1 // pred_fallthru
      _
    // Predicated region
    $region42: #{tpu_custom_call.1} parent=1 // pred_check
      _
    $region43: #{tpu_custom_call.1} parent=1 // pred_check_branch
      %40 = sbr.rel (0) target = $region45
    $region44: #{tpu_custom_call.1} parent=1 // pred_region
      _
    $region45: #{tpu_custom_call.1} parent=1 // pred_fallthru
      _
    // Predicated region
    $region46: #{tpu_custom_call.1} parent=1 // pred_check
      _
    $region47: #{tpu_custom_call.1} parent=1 // pred_check_branch
      %42 = sbr.rel (0) target = $region49
    $region48: #{tpu_custom_call.1} parent=1 // pred_region
      _
    $region49: #{tpu_custom_call.1} parent=1 // pred_fallthru
      _
    // Predicated region
    $region50: #{tpu_custom_call.1} parent=1 // pred_check
      _
    $region51: #{tpu_custom_call.1} parent=1 // pred_check_branch
      %44 = sbr.rel (0) target = $region53
    $region52: #{tpu_custom_call.1} parent=1 // pred_region
      _
    $region53: #{tpu_custom_call.1} parent=1 // pred_fallthru
      _
    %v46 = vld [vmem:[%s0] sm:$0xff]
    %v47 = vld [vmem:[%s0 + $0x8] sm:$0xff]
    %v48 = vld [vmem:[%s0 + $0x10] sm:$0xff]
    %v49 = vld [vmem:[%s0 + $0x18] sm:$0xff]
    %v50 = vld [vmem:[%s0 + $0x20] sm:$0xff]
    %v51 = vld [vmem:[%s0 + $0x28] sm:$0xff]
    %v52 = vld [vmem:[%s0 + $0x30] sm:$0xff]
    %v53 = vpack.c.bf16 %v46, %v46
    %v54 = vpack.c.bf16 %v47, %v47
    %v55 = vpack.c.bf16 %v48, %v48
    %v56 = vpack.c.bf16 %v49, %v49
    %v57 = vpack.c.bf16 %v50, %v50
    %v58 = vpack.c.bf16 %v51, %v51
    %v59 = vpack.c.bf16 %v52, %v52
    %v60 = vld [vmem:[%s1] sm:$0xf]
    %v61 = vld [vmem:[%s1 + $0x4] sm:$0xf]
    %v62 = vld [vmem:[%s1 + $0x8] sm:$0xf]
    %v63 = vld [vmem:[%s1 + $0xc] sm:$0xf]
    %v64 = vld [vmem:[%s1 + $0x10] sm:$0xf]
    %v65 = vld [vmem:[%s1 + $0x14] sm:$0xf]
    %v66 = vld [vmem:[%s1 + $0x18] sm:$0xf]
    %v67 = vld [vmem:[%s1 + $0x1c] sm:$0xf]
    %v68 = vld [vmem:[%s1 + $0x20] sm:$0xf]
    %v69 = vld [vmem:[%s1 + $0x24] sm:$0xf]
    %v70 = vld [vmem:[%s1 + $0x28] sm:$0xf]
    %v71 = vld [vmem:[%s1 + $0x2c] sm:$0xf]
    %v72 = vld [vmem:[%s1 + $0x30] sm:$0xf]
    %v73 = vld [vmem:[%s1 + $0x34] sm:$0xf]
    %v74 = vld [vmem:[%s1 + $0x38] sm:$0xf]
    %v75 = vld [vmem:[%s1 + $0x3c] sm:$0xf]
    %v76 = vld [vmem:[%s1 + $0x40] sm:$0xf]
    %v77 = vld [vmem:[%s1 + $0x44] sm:$0xf]
    %v78 = vld [vmem:[%s1 + $0x48] sm:$0xf]
    %v79 = vld [vmem:[%s1 + $0x4c] sm:$0xf]
    %v80 = vld [vmem:[%s1 + $0x50] sm:$0xf]
    %v81 = vld [vmem:[%s1 + $0x54] sm:$0xf]
    %v82 = vld [vmem:[%s1 + $0x58] sm:$0xf]
    %v83 = vld [vmem:[%s1 + $0x5c] sm:$0xf]
    %v84 = vld [vmem:[%s1 + $0x60] sm:$0xf]
    %v85 = vld [vmem:[%s1 + $0x64] sm:$0xf]
    %v86 = vld [vmem:[%s1 + $0x68] sm:$0xf]
    %v87 = vld [vmem:[%s1 + $0x6c] sm:$0xf]
    %v88 = vld [vmem:[%s1 + $0x70] sm:$0xf]
    %v89 = vld [vmem:[%s1 + $0x74] sm:$0xf]
    %v90 = vld [vmem:[%s1 + $0x78] sm:$0xf]
    %v91 = vld [vmem:[%s1 + $0x7c] sm:$0xf]
    %v92 = vld [vmem:[%s1 + $0x80] sm:$0xf]
    %v93 = vld [vmem:[%s1 + $0x84] sm:$0xf]
    %v94 = vld [vmem:[%s1 + $0x88] sm:$0xf]
    %v95 = vld [vmem:[%s1 + $0x8c] sm:$0xf]
    %v96 = vld [vmem:[%s1 + $0x90] sm:$0xf]
    %v97 = vld [vmem:[%s1 + $0x94] sm:$0xf]
    %v98 = vld [vmem:[%s1 + $0x98] sm:$0xf]
    %v99 = vld [vmem:[%s1 + $0x9c] sm:$0xf]
    %v100 = vld [vmem:[%s1 + $0xa0] sm:$0xf]
    %v101 = vld [vmem:[%s1 + $0xa4] sm:$0xf]
    %v102 = vld [vmem:[%s1 + $0xa8] sm:$0xf]
    %v103 = vld [vmem:[%s1 + $0xac] sm:$0xf]
    %v104 = vld [vmem:[%s1 + $0xb0] sm:$0xf]
    %v105 = vld [vmem:[%s1 + $0xb4] sm:$0xf]
    %v106 = vld [vmem:[%s1 + $0xb8] sm:$0xf]
    %v107 = vld [vmem:[%s1 + $0xbc] sm:$0xf]
    %v108 = vld [vmem:[%s1 + $0xc0] sm:$0xf]
    %v109 = vld [vmem:[%s1 + $0xc4] sm:$0xf]
    %v110 = vld [vmem:[%s1 + $0xc8] sm:$0xf]
    %v111 = vld [vmem:[%s1 + $0xcc] sm:$0xf]
    %v112 = vld [vmem:[%s1 + $0xd0] sm:$0xf]
    %v113 = vld [vmem:[%s1 + $0xd4] sm:$0xf]
    %v114 = vld [vmem:[%s1 + $0xd8] sm:$0xf]
    %v115 = vld [vmem:[%s1 + $0xdc] sm:$0xf]
    %v116 = vld [vmem:[%s1 + $0xe0] sm:$0xf]
    %v117 = vld [vmem:[%s1 + $0xe4] sm:$0xf]
    %v118 = vld [vmem:[%s1 + $0xe8] sm:$0xf]
    %v119 = vld [vmem:[%s1 + $0xec] sm:$0xf]
    %v120 = vld [vmem:[%s1 + $0xf0] sm:$0xf]
    %v121 = vld [vmem:[%s1 + $0xf4] sm:$0xf]
    %v122 = vld [vmem:[%s1 + $0xf8] sm:$0xf]
    %v123 = vld [vmem:[%s1 + $0xfc] sm:$0xf]
    %v124 = vld [vmem:[%s1 + $0x100] sm:$0xf]
    %v125 = vld [vmem:[%s1 + $0x104] sm:$0xf]
    %v126 = vld [vmem:[%s1 + $0x108] sm:$0xf]
    %v127 = vld [vmem:[%s1 + $0x10c] sm:$0xf]
    %v128 = vld [vmem:[%s1 + $0x110] sm:$0xf]
    %v129 = vld [vmem:[%s1 + $0x114] sm:$0xf]
    %v130 = vld [vmem:[%s1 + $0x118] sm:$0xf]
    %v131 = vld [vmem:[%s1 + $0x11c] sm:$0xf]
    %v132 = vld [vmem:[%s1 + $0x120] sm:$0xf]
    %v133 = vld [vmem:[%s1 + $0x124] sm:$0xf]
    %v134 = vld [vmem:[%s1 + $0x128] sm:$0xf]
    %v135 = vld [vmem:[%s1 + $0x12c] sm:$0xf]
    %v136 = vld [vmem:[%s1 + $0x130] sm:$0xf]
    %v137 = vld [vmem:[%s1 + $0x134] sm:$0xf]
    %v138 = vld [vmem:[%s1 + $0x138] sm:$0xf]
    %v139 = vld [vmem:[%s1 + $0x13c] sm:$0xf]
    %v140 = vld [vmem:[%s1 + $0x140] sm:$0xf]
    %v141 = vld [vmem:[%s1 + $0x144] sm:$0xf]
    %v142 = vld [vmem:[%s1 + $0x148] sm:$0xf]
    %v143 = vld [vmem:[%s1 + $0x14c] sm:$0xf]
    %v144 = vld [vmem:[%s1 + $0x150] sm:$0xf]
    %v145 = vld [vmem:[%s1 + $0x154] sm:$0xf]
    %v146 = vld [vmem:[%s1 + $0x158] sm:$0xf]
    %v147 = vld [vmem:[%s1 + $0x15c] sm:$0xf]
    %v148 = vld [vmem:[%s1 + $0x160] sm:$0xf]
    %v149 = vld [vmem:[%s1 + $0x164] sm:$0xf]
    %v150 = vld [vmem:[%s1 + $0x168] sm:$0xf]
    %v151 = vld [vmem:[%s1 + $0x16c] sm:$0xf]
    %v152 = vld [vmem:[%s1 + $0x170] sm:$0xf]
    %v153 = vld [vmem:[%s1 + $0x174] sm:$0xf]
    %v154 = vld [vmem:[%s1 + $0x178] sm:$0xf]
    %v155 = vld [vmem:[%s1 + $0x17c] sm:$0xf]
    %v156 = vld [vmem:[%s1 + $0x180] sm:$0xf]
    %v157 = vld [vmem:[%s1 + $0x184] sm:$0xf]
    %v158 = vld [vmem:[%s2] sm:$0x1]
    %v160 = vperm.slane %v158, 0
    %v260 = vunpack.c.l.b16 %v60
    %v261 = vunpack.c.l.b16 %v61
    %v262 = vunpack.c.l.b16 %v62
    %v263 = vunpack.c.l.b16 %v63
    %v264 = vunpack.c.l.b16 %v64
    %v265 = vunpack.c.l.b16 %v65
    %v266 = vunpack.c.l.b16 %v66
    %v267 = vunpack.c.l.b16 %v67
    %v268 = vunpack.c.l.b16 %v68
    %v269 = vunpack.c.l.b16 %v69
    %v270 = vunpack.c.l.b16 %v70
    %v271 = vunpack.c.l.b16 %v71
    %v272 = vunpack.c.l.b16 %v72
    %v273 = vunpack.c.l.b16 %v73
    %v274 = vunpack.c.l.b16 %v74
    %v275 = vunpack.c.l.b16 %v75
    %v276 = vunpack.c.l.b16 %v76
    %v277 = vunpack.c.l.b16 %v77
    %v278 = vunpack.c.l.b16 %v78
    %v279 = vunpack.c.l.b16 %v79
    %v280 = vunpack.c.l.b16 %v80
    %v281 = vunpack.c.l.b16 %v81
    %v282 = vunpack.c.l.b16 %v82
    %v283 = vunpack.c.l.b16 %v83
    %v284 = vunpack.c.l.b16 %v84
    %v285 = vunpack.c.l.b16 %v85
    %v286 = vunpack.c.l.b16 %v86
    %v287 = vunpack.c.l.b16 %v87
    %v288 = vunpack.c.l.b16 %v88
    %v289 = vunpack.c.l.b16 %v89
    %v290 = vunpack.c.l.b16 %v90
    %v291 = vunpack.c.l.b16 %v91
    %v292 = vunpack.c.l.b16 %v92
    %v293 = vunpack.c.l.b16 %v93
    %v294 = vunpack.c.l.b16 %v94
    %v295 = vunpack.c.l.b16 %v95
    %v296 = vunpack.c.l.b16 %v96
    %v297 = vunpack.c.l.b16 %v97
    %v298 = vunpack.c.l.b16 %v98
    %v299 = vunpack.c.l.b16 %v99
    %v300 = vunpack.c.l.b16 %v100
    %v301 = vunpack.c.l.b16 %v101
    %v302 = vunpack.c.l.b16 %v102
    %v303 = vunpack.c.l.b16 %v103
    %v304 = vunpack.c.l.b16 %v104
    %v305 = vunpack.c.l.b16 %v105
    %v306 = vunpack.c.l.b16 %v106
    %v307 = vunpack.c.l.b16 %v107
    %v308 = vunpack.c.l.b16 %v108
    %v309 = vunpack.c.l.b16 %v109
    %v310 = vunpack.c.l.b16 %v110
    %v311 = vunpack.c.l.b16 %v111
    %v312 = vunpack.c.l.b16 %v112
    %v313 = vunpack.c.l.b16 %v113
    %v314 = vunpack.c.l.b16 %v114
    %v315 = vunpack.c.l.b16 %v115
    %v316 = vunpack.c.l.b16 %v116
    %v317 = vunpack.c.l.b16 %v117
    %v318 = vunpack.c.l.b16 %v118
    %v319 = vunpack.c.l.b16 %v119
    %v320 = vunpack.c.l.b16 %v120
    %v321 = vunpack.c.l.b16 %v121
    %v322 = vunpack.c.l.b16 %v122
    %v323 = vunpack.c.l.b16 %v123
    %v324 = vunpack.c.l.b16 %v124
    %v325 = vunpack.c.l.b16 %v125
    %v326 = vunpack.c.l.b16 %v126
    %v327 = vunpack.c.l.b16 %v127
    %v328 = vunpack.c.l.b16 %v128
    %v329 = vunpack.c.l.b16 %v129
    %v330 = vunpack.c.l.b16 %v130
    %v331 = vunpack.c.l.b16 %v131
    %v332 = vunpack.c.l.b16 %v132
    %v333 = vunpack.c.l.b16 %v133
    %v334 = vunpack.c.l.b16 %v134
    %v335 = vunpack.c.l.b16 %v135
    %v336 = vunpack.c.l.b16 %v136
    %v337 = vunpack.c.l.b16 %v137
    %v338 = vunpack.c.l.b16 %v138
    %v339 = vunpack.c.l.b16 %v139
    %v340 = vunpack.c.l.b16 %v140
    %v341 = vunpack.c.l.b16 %v141
    %v342 = vunpack.c.l.b16 %v142
    %v343 = vunpack.c.l.b16 %v143
    %v344 = vunpack.c.l.b16 %v144
    %v345 = vunpack.c.l.b16 %v145
    %v346 = vunpack.c.l.b16 %v146
    %v347 = vunpack.c.l.b16 %v147
    %v348 = vunpack.c.l.b16 %v148
    %v349 = vunpack.c.l.b16 %v149
    %v350 = vunpack.c.l.b16 %v150
    %v351 = vunpack.c.l.b16 %v151
    %v352 = vunpack.c.l.b16 %v152
    %v353 = vunpack.c.l.b16 %v153
    %v354 = vunpack.c.l.b16 %v154
    %v355 = vunpack.c.l.b16 %v155
    %v356 = vunpack.c.l.b16 %v156
    %v357 = vunpack.c.l.b16 %v157
    %v358 = vpack.c.b16 %v261, %v260
    %v359 = vpack.c.b16 %v263, %v262
    %v360 = vpack.c.b16 %v265, %v264
    %v361 = vpack.c.b16 %v267, %v266
    %v362 = vpack.c.b16 %v269, %v268
    %v363 = vpack.c.b16 %v271, %v270
    %v364 = vpack.c.b16 %v273, %v272
    %v365 = vpack.c.b16 %v275, %v274
    %v366 = vpack.c.b16 %v277, %v276
    %v367 = vpack.c.b16 %v279, %v278
    %v368 = vpack.c.b16 %v281, %v280
    %v369 = vpack.c.b16 %v283, %v282
    %v370 = vpack.c.b16 %v285, %v284
    %v371 = vpack.c.b16 %v287, %v286
    %v372 = vpack.c.b16 %v289, %v288
    %v373 = vpack.c.b16 %v291, %v290
    %v374 = vpack.c.b16 %v293, %v292
    %v375 = vpack.c.b16 %v295, %v294
    %v376 = vpack.c.b16 %v297, %v296
    %v377 = vpack.c.b16 %v299, %v298
    %v378 = vpack.c.b16 %v301, %v300
    %v379 = vpack.c.b16 %v303, %v302
    %v380 = vpack.c.b16 %v305, %v304
    %v381 = vpack.c.b16 %v307, %v306
    %v382 = vpack.c.b16 %v309, %v308
    %v383 = vpack.c.b16 %v311, %v310
    %v384 = vpack.c.b16 %v313, %v312
    %v385 = vpack.c.b16 %v315, %v314
    %v386 = vpack.c.b16 %v317, %v316
    %v387 = vpack.c.b16 %v319, %v318
    %v388 = vpack.c.b16 %v321, %v320
    %v389 = vpack.c.b16 %v323, %v322
    %v390 = vpack.c.b16 %v325, %v324
    %v391 = vpack.c.b16 %v327, %v326
    %v392 = vpack.c.b16 %v329, %v328
    %v393 = vpack.c.b16 %v331, %v330
    %v394 = vpack.c.b16 %v333, %v332
    %v395 = vpack.c.b16 %v335, %v334
    %v396 = vpack.c.b16 %v337, %v336
    %v397 = vpack.c.b16 %v339, %v338
    %v398 = vpack.c.b16 %v341, %v340
    %v399 = vpack.c.b16 %v343, %v342
    %v400 = vpack.c.b16 %v345, %v344
    %v401 = vpack.c.b16 %v347, %v346
    %v402 = vpack.c.b16 %v349, %v348
    %v403 = vpack.c.b16 %v351, %v350
    %v404 = vpack.c.b16 %v353, %v352
    %v405 = vpack.c.b16 %v355, %v354
    %v406 = vpack.c.b16 %v357, %v356
    %vm456 = vcmask 130048
    %v458 = vsel %vm456, %v59, 0
    %460 = vmatpush.bf16.msra.mxu0 %v365
    %461 = vmatpush.bf16.msra.mxu0 %v364
    %462 = vmatpush.bf16.msra.mxu0 %v363
    %463 = vmatpush.bf16.msra.mxu0 %v362
    %464 = vmatpush.bf16.msra.mxu0 %v361
    %465 = vmatpush.bf16.msra.mxu0 %v360
    %466 = vmatpush.bf16.msra.mxu0 %v359
    %467 = vmatpush.bf16.msra.mxu0 %v358
    %468 = vmatmul.bf16.gmra.mxu0 %v53
    %v469 = vpop.f32.mrf.mxu0
    %v470 = vadd.f32 %v160, %v469
    %v471 = vpop.f32.mrf.mxu0
    %472 = vdwg.mxu0
    %473 = vmatpush.bf16.msra.mxu0 %v373
    %474 = vmatpush.bf16.msra.mxu0 %v372
    %475 = vmatpush.bf16.msra.mxu0 %v371
    %476 = vmatpush.bf16.msra.mxu0 %v370
    %477 = vmatpush.bf16.msra.mxu0 %v369
    %478 = vmatpush.bf16.msra.mxu0 %v368
    %479 = vmatpush.bf16.msra.mxu0 %v367
    %480 = vmatpush.bf16.msra.mxu0 %v366
    %481 = vmatmul.bf16.gmra.mxu0 %v54
    %v482 = vpop.f32.mrf.mxu0
    %v483 = vadd.f32 %v470, %v482
    %v484 = vpop.f32.mrf.mxu0
    %485 = vdwg.mxu0
    %486 = vmatpush.bf16.msra.mxu0 %v381
    %487 = vmatpush.bf16.msra.mxu0 %v380
    %488 = vmatpush.bf16.msra.mxu0 %v379
    %489 = vmatpush.bf16.msra.mxu0 %v378
    %490 = vmatpush.bf16.msra.mxu0 %v377
    %491 = vmatpush.bf16.msra.mxu0 %v376
    %492 = vmatpush.bf16.msra.mxu0 %v375
    %493 = vmatpush.bf16.msra.mxu0 %v374
    %494 = vmatmul.bf16.gmra.mxu0 %v55
    %v495 = vpop.f32.mrf.mxu0
    %v496 = vadd.f32 %v483, %v495
    %v497 = vpop.f32.mrf.mxu0
    %498 = vdwg.mxu0
    %499 = vmatpush.bf16.msra.mxu0 %v389
    %500 = vmatpush.bf16.msra.mxu0 %v388
    %501 = vmatpush.bf16.msra.mxu0 %v387
    %502 = vmatpush.bf16.msra.mxu0 %v386
    %503 = vmatpush.bf16.msra.mxu0 %v385
    %504 = vmatpush.bf16.msra.mxu0 %v384
    %505 = vmatpush.bf16.msra.mxu0 %v383
    %506 = vmatpush.bf16.msra.mxu0 %v382
    %507 = vmatmul.bf16.gmra.mxu0 %v56
    %v508 = vpop.f32.mrf.mxu0
    %v509 = vadd.f32 %v496, %v508
    %v510 = vpop.f32.mrf.mxu0
    %511 = vdwg.mxu0
    %512 = vmatpush.bf16.msra.mxu0 %v397
    %513 = vmatpush.bf16.msra.mxu0 %v396
    %514 = vmatpush.bf16.msra.mxu0 %v395
    %515 = vmatpush.bf16.msra.mxu0 %v394
    %516 = vmatpush.bf16.msra.mxu0 %v393
    %517 = vmatpush.bf16.msra.mxu0 %v392
    %518 = vmatpush.bf16.msra.mxu0 %v391
    %519 = vmatpush.bf16.msra.mxu0 %v390
    %520 = vmatmul.bf16.gmra.mxu0 %v57
    %v521 = vpop.f32.mrf.mxu0
    %v522 = vadd.f32 %v509, %v521
    %v523 = vpop.f32.mrf.mxu0
    %524 = vdwg.mxu0
    %525 = vmatpush.bf16.msra.mxu0 %v405
    %526 = vmatpush.bf16.msra.mxu0 %v404
    %527 = vmatpush.bf16.msra.mxu0 %v403
    %528 = vmatpush.bf16.msra.mxu0 %v402
    %529 = vmatpush.bf16.msra.mxu0 %v401
    %530 = vmatpush.bf16.msra.mxu0 %v400
    %531 = vmatpush.bf16.msra.mxu0 %v399
    %532 = vmatpush.bf16.msra.mxu0 %v398
    %533 = vmatmul.bf16.gmra.mxu0 %v58
    %v534 = vpop.f32.mrf.mxu0
    %v535 = vadd.f32 %v522, %v534
    %v536 = vpop.f32.mrf.mxu0
    %537 = vdwg.mxu0
    %538 = vmatpush.bf16.msra.mxu0 0
    %539 = vmatpush.bf16.msra.mxu0 0
    %540 = vmatpush.bf16.msra.mxu0 0
    %541 = vmatpush.bf16.msra.mxu0 0
    %542 = vmatpush.bf16.msra.mxu0 0
    %543 = vmatpush.bf16.msra.mxu0 0
    %544 = vmatpush.bf16.msra.mxu0 0
    %545 = vmatpush.bf16.msra.mxu0 %v406
    %546 = vmatmul.bf16.gmra.mxu0 %v458
    %v547 = vpop.f32.mrf.mxu0
    %v548 = vadd.f32 %v535, %v547
    %v549 = vpop.f32.mrf.mxu0
    %550 = vdwg.mxu0
    %v551 = vmax.f32 %v548, 0.0
    %v552 = vpack.c.bf16 %v551, %v551
    %v553 = vld [vmem:[%s3] sm:$0xf]
    %v554 = vld [vmem:[%s3 + $0x4] sm:$0xf]
    %v555 = vld [vmem:[%s3 + $0x8] sm:$0xf]
    %v556 = vld [vmem:[%s3 + $0xc] sm:$0xf]
    %v557 = vld [vmem:[%s3 + $0x10] sm:$0xf]
    %v558 = vld [vmem:[%s3 + $0x14] sm:$0xf]
    %v559 = vld [vmem:[%s3 + $0x18] sm:$0xf]
    %v560 = vld [vmem:[%s3 + $0x1c] sm:$0xf]
    %v561 = vld [vmem:[%s3 + $0x20] sm:$0xf]
    %v562 = vld [vmem:[%s3 + $0x24] sm:$0xf]
    %v563 = vld [vmem:[%s3 + $0x28] sm:$0xf]
    %v564 = vld [vmem:[%s3 + $0x2c] sm:$0xf]
    %v565 = vld [vmem:[%s3 + $0x30] sm:$0xf]
    %v566 = vld [vmem:[%s3 + $0x34] sm:$0xf]
    %v567 = vld [vmem:[%s3 + $0x38] sm:$0xf]
    %v568 = vld [vmem:[%s3 + $0x3c] sm:$0xf]
    %v569 = vld [vmem:[%s4] sm:$0x1]
    %v571 = vperm.slane %v569, 0
    %v589 = vunpack.c.l.b16 %v553
    %v590 = vunpack.c.l.b16 %v554
    %v591 = vunpack.c.l.b16 %v555
    %v592 = vunpack.c.l.b16 %v556
    %v593 = vunpack.c.l.b16 %v557
    %v594 = vunpack.c.l.b16 %v558
    %v595 = vunpack.c.l.b16 %v559
    %v596 = vunpack.c.l.b16 %v560
    %v597 = vunpack.c.l.b16 %v561
    %v598 = vunpack.c.l.b16 %v562
    %v599 = vunpack.c.l.b16 %v563
    %v600 = vunpack.c.l.b16 %v564
    %v601 = vunpack.c.l.b16 %v565
    %v602 = vunpack.c.l.b16 %v566
    %v603 = vunpack.c.l.b16 %v567
    %v604 = vunpack.c.l.b16 %v568
    %v605 = vpack.c.b16 %v590, %v589
    %v606 = vpack.c.b16 %v592, %v591
    %v607 = vpack.c.b16 %v594, %v593
    %v608 = vpack.c.b16 %v596, %v595
    %v609 = vpack.c.b16 %v598, %v597
    %v610 = vpack.c.b16 %v600, %v599
    %v611 = vpack.c.b16 %v602, %v601
    %v612 = vpack.c.b16 %v604, %v603
    %621 = vmatpush.bf16.msra.mxu0 %v612
    %622 = vmatpush.bf16.msra.mxu0 %v611
    %623 = vmatpush.bf16.msra.mxu0 %v610
    %624 = vmatpush.bf16.msra.mxu0 %v609
    %625 = vmatpush.bf16.msra.mxu0 %v608
    %626 = vmatpush.bf16.msra.mxu0 %v607
    %627 = vmatpush.bf16.msra.mxu0 %v606
    %628 = vmatpush.bf16.msra.mxu0 %v605
    %629 = vmatmul.bf16.gmra.mxu0 %v552
    %v630 = vpop.f32.mrf.mxu0
    %v631 = vadd.f32 %v571, %v630
    %v632 = vpop.f32.mrf.mxu0
    %633 = vdwg.mxu0
    %v634 = vmax.f32 %v631, 0.0
    %v635 = vpack.c.bf16 %v634, %v634
    %v636 = vld [vmem:[%s5] sm:$0xf]
    %v637 = vld [vmem:[%s5 + $0x4] sm:$0xf]
    %v638 = vld [vmem:[%s5 + $0x8] sm:$0xf]
    %v639 = vld [vmem:[%s5 + $0xc] sm:$0xf]
    %v640 = vld [vmem:[%s5 + $0x10] sm:$0xf]
    %v641 = vld [vmem:[%s5 + $0x14] sm:$0xf]
    %v642 = vld [vmem:[%s5 + $0x18] sm:$0xf]
    %v643 = vld [vmem:[%s5 + $0x1c] sm:$0xf]
    %v644 = vld [vmem:[%s6] sm:$0x1]
    %v646 = vperm.slane %v644, 0
    %v656 = vunpack.c.l.b16 %v636
    %v657 = vunpack.c.l.b16 %v637
    %v658 = vunpack.c.l.b16 %v638
    %v659 = vunpack.c.l.b16 %v639
    %v660 = vunpack.c.l.b16 %v640
    %v661 = vunpack.c.l.b16 %v641
    %v662 = vunpack.c.l.b16 %v642
    %v663 = vunpack.c.l.b16 %v643
    %v664 = vpack.c.b16 %v657, %v656
    %v665 = vpack.c.b16 %v659, %v658
    %v666 = vpack.c.b16 %v661, %v660
    %v667 = vpack.c.b16 %v663, %v662
    %vm672 = vcmask 523264
    %v674 = vsel %vm672, %v635, 0
    %676 = vmatpush.bf16.msra.mxu0 0
    %677 = vmatpush.bf16.msra.mxu0 0
    %678 = vmatpush.bf16.msra.mxu0 0
    %679 = vmatpush.bf16.msra.mxu0 0
    %680 = vmatpush.bf16.msra.mxu0 %v667
    %681 = vmatpush.bf16.msra.mxu0 %v666
    %682 = vmatpush.bf16.msra.mxu0 %v665
    %683 = vmatpush.bf16.msra.mxu0 %v664
    %684 = vmatmul.bf16.gmra.mxu0 %v674
    %v685 = vpop.f32.mrf.mxu0
    %v686 = vadd.f32 %v646, %v685
    %v687 = vpop.f32.mrf.mxu0
    %688 = vdwg.mxu0
    %v689 = vmax.f32 %v686, 0.0
    %v690 = vpack.c.bf16 %v689, %v689
    %v691 = vld [vmem:[%s7] sm:$0xf]
    %v692 = vld [vmem:[%s7 + $0x4] sm:$0xf]
    %v693 = vld [vmem:[%s7 + $0x8] sm:$0xf]
    %v694 = vld [vmem:[%s7 + $0xc] sm:$0xf]
    %v695 = vld [vmem:[%s7 + $0x10] sm:$0xf]
    %v696 = vld [vmem:[%s7 + $0x14] sm:$0xf]
    %v697 = vld [vmem:[%s7 + $0x18] sm:$0xf]
    %v698 = vld [vmem:[%s7 + $0x1c] sm:$0xf]
    %v699 = vld [vmem:[%s7 + $0x20] sm:$0xf]
    %v700 = vld [vmem:[%s7 + $0x24] sm:$0xf]
    %v701 = vld [vmem:[%s7 + $0x28] sm:$0xf]
    %v702 = vld [vmem:[%s7 + $0x2c] sm:$0xf]
    %v703 = vld [vmem:[%s7 + $0x30] sm:$0xf]
    %v704 = vld [vmem:[%s7 + $0x34] sm:$0xf]
    %v705 = vld [vmem:[%s7 + $0x38] sm:$0xf]
    %v706 = vld [vmem:[%s7 + $0x3c] sm:$0xf]
    %v707 = vld [vmem:[%s8] sm:$0x1]
    %v709 = vperm.slane %v707, 0
    %v727 = vunpack.c.l.b16 %v691
    %v728 = vunpack.c.l.b16 %v692
    %v729 = vunpack.c.l.b16 %v693
    %v730 = vunpack.c.l.b16 %v694
    %v731 = vunpack.c.l.b16 %v695
    %v732 = vunpack.c.l.b16 %v696
    %v733 = vunpack.c.l.b16 %v697
    %v734 = vunpack.c.l.b16 %v698
    %v735 = vunpack.c.l.b16 %v699
    %v736 = vunpack.c.l.b16 %v700
    %v737 = vunpack.c.l.b16 %v701
    %v738 = vunpack.c.l.b16 %v702
    %v739 = vunpack.c.l.b16 %v703
    %v740 = vunpack.c.l.b16 %v704
    %v741 = vunpack.c.l.b16 %v705
    %v742 = vunpack.c.l.b16 %v706
    %v743 = vpack.c.b16 %v728, %v727
    %v744 = vpack.c.b16 %v730, %v729
    %v745 = vpack.c.b16 %v732, %v731
    %v746 = vpack.c.b16 %v734, %v733
    %v747 = vpack.c.b16 %v736, %v735
    %v748 = vpack.c.b16 %v738, %v737
    %v749 = vpack.c.b16 %v740, %v739
    %v750 = vpack.c.b16 %v742, %v741
    %759 = vmatpush.bf16.msra.mxu0 %v750
    %760 = vmatpush.bf16.msra.mxu0 %v749
    %761 = vmatpush.bf16.msra.mxu0 %v748
    %762 = vmatpush.bf16.msra.mxu0 %v747
    %763 = vmatpush.bf16.msra.mxu0 %v746
    %764 = vmatpush.bf16.msra.mxu0 %v745
    %765 = vmatpush.bf16.msra.mxu0 %v744
    %766 = vmatpush.bf16.msra.mxu0 %v743
    %767 = vmatmul.bf16.gmra.mxu0 %v690
    %v768 = vpop.f32.mrf.mxu0
    %v769 = vadd.f32 %v709, %v768
    %v770 = vpop.f32.mrf.mxu0
    %771 = vdwg.mxu0
    %v772 = vmax.f32 %v769, 0.0
    %v773 = vpack.c.bf16 %v772, %v772
    %v774 = vld [vmem:[%s9] sm:$0xf]
    %v775 = vld [vmem:[%s9 + $0x4] sm:$0xf]
    %v776 = vld [vmem:[%s9 + $0x8] sm:$0xf]
    %v777 = vld [vmem:[%s9 + $0xc] sm:$0xf]
    %v778 = vld [vmem:[%s9 + $0x10] sm:$0xf]
    %v779 = vld [vmem:[%s9 + $0x14] sm:$0xf]
    %v780 = vld [vmem:[%s9 + $0x18] sm:$0xf]
    %v781 = vld [vmem:[%s9 + $0x1c] sm:$0xf]
    %v782 = vld [vmem:[%s10] sm:$0x1]
    %v784 = vperm.slane %v782, 0
    %v794 = vunpack.c.l.b16 %v774
    %v795 = vunpack.c.l.b16 %v775
    %v796 = vunpack.c.l.b16 %v776
    %v797 = vunpack.c.l.b16 %v777
    %v798 = vunpack.c.l.b16 %v778
    %v799 = vunpack.c.l.b16 %v779
    %v800 = vunpack.c.l.b16 %v780
    %v801 = vunpack.c.l.b16 %v781
    %v802 = vpack.c.b16 %v795, %v794
    %v803 = vpack.c.b16 %v797, %v796
    %v804 = vpack.c.b16 %v799, %v798
    %v805 = vpack.c.b16 %v801, %v800
    %v811 = vsel %vm672, %v773, 0
    %813 = vmatpush.bf16.msra.mxu0 0
    %814 = vmatpush.bf16.msra.mxu0 0
    %815 = vmatpush.bf16.msra.mxu0 0
    %816 = vmatpush.bf16.msra.mxu0 0
    %817 = vmatpush.bf16.msra.mxu0 %v805
    %818 = vmatpush.bf16.msra.mxu0 %v804
    %819 = vmatpush.bf16.msra.mxu0 %v803
    %820 = vmatpush.bf16.msra.mxu0 %v802
    %821 = vmatmul.bf16.gmra.mxu0 %v811
    %v822 = vpop.f32.mrf.mxu0
    %v823 = vadd.f32 %v784, %v822
    %v824 = vpop.f32.mrf.mxu0
    %825 = vdwg.mxu0
    %v826 = vmax.f32 %v823, 0.0
    %v827 = vpack.c.bf16 %v826, %v826
    %v828 = vld [vmem:[%s11] sm:$0xff]
    %v829 = vld [vmem:[%s11 + $0x8] sm:$0xff]
    %v830 = vld [vmem:[%s11 + $0x10] sm:$0xff]
    %v831 = vld [vmem:[%s11 + $0x18] sm:$0xf]
    %v832 = vld [vmem:[%s11 + $0x1c] sm:$0xff]
    %v833 = vld [vmem:[%s11 + $0x24] sm:$0xff]
    %v834 = vld [vmem:[%s11 + $0x2c] sm:$0xff]
    %v835 = vld [vmem:[%s11 + $0x34] sm:$0xf]
    %v836 = vld [vmem:[%s11 + $0x38] sm:$0xff]
    %v837 = vld [vmem:[%s11 + $0x40] sm:$0xff]
    %v838 = vld [vmem:[%s11 + $0x48] sm:$0xff]
    %v839 = vld [vmem:[%s11 + $0x50] sm:$0xf]
    %v840 = vld [vmem:[%s11 + $0x54] sm:$0xff]
    %v841 = vld [vmem:[%s11 + $0x5c] sm:$0xff]
    %v842 = vld [vmem:[%s11 + $0x64] sm:$0xff]
    %v843 = vld [vmem:[%s11 + $0x6c] sm:$0xf]
    %v844 = vld [vmem:[%s11 + $0x70] sm:$0xff]
    %v845 = vld [vmem:[%s11 + $0x78] sm:$0xff]
    %v846 = vld [vmem:[%s11 + $0x80] sm:$0xff]
    %v847 = vld [vmem:[%s11 + $0x88] sm:$0xf]
    %v848 = vld [vmem:[%s11 + $0x8c] sm:$0xff]
    %v849 = vld [vmem:[%s11 + $0x94] sm:$0xff]
    %v850 = vld [vmem:[%s11 + $0x9c] sm:$0xff]
    %v851 = vld [vmem:[%s11 + $0xa4] sm:$0xf]
    %v852 = vld [vmem:[%s11 + $0xa8] sm:$0xff]
    %v853 = vld [vmem:[%s11 + $0xb0] sm:$0xff]
    %v854 = vld [vmem:[%s11 + $0xb8] sm:$0xff]
    %v855 = vld [vmem:[%s11 + $0xc0] sm:$0xf]
    %v856 = vld [vmem:[%s11 + $0xc4] sm:$0xff]
    %v857 = vld [vmem:[%s11 + $0xcc] sm:$0xff]
    %v858 = vld [vmem:[%s11 + $0xd4] sm:$0xff]
    %v859 = vld [vmem:[%s11 + $0xdc] sm:$0xf]
    %v860 = vld [vmem:[%s11 + $0xe0] sm:$0xff]
    %v861 = vld [vmem:[%s11 + $0xe8] sm:$0xff]
    %v862 = vld [vmem:[%s11 + $0xf0] sm:$0xff]
    %v863 = vld [vmem:[%s11 + $0xf8] sm:$0xf]
    %v864 = vld [vmem:[%s11 + $0xfc] sm:$0xff]
    %v865 = vld [vmem:[%s11 + $0x104] sm:$0xff]
    %v866 = vld [vmem:[%s11 + $0x10c] sm:$0xff]
    %v867 = vld [vmem:[%s11 + $0x114] sm:$0xf]
    %v868 = vld [vmem:[%s11 + $0x118] sm:$0xff]
    %v869 = vld [vmem:[%s11 + $0x120] sm:$0xff]
    %v870 = vld [vmem:[%s11 + $0x128] sm:$0xff]
    %v871 = vld [vmem:[%s11 + $0x130] sm:$0xf]
    %v872 = vld [vmem:[%s11 + $0x134] sm:$0xff]
    %v873 = vld [vmem:[%s11 + $0x13c] sm:$0xff]
    %v874 = vld [vmem:[%s11 + $0x144] sm:$0xff]
    %v875 = vld [vmem:[%s11 + $0x14c] sm:$0xf]
    %v876 = vld [vmem:[%s11 + $0x150] sm:$0xff]
    %v877 = vld [vmem:[%s11 + $0x158] sm:$0xff]
    %v878 = vld [vmem:[%s11 + $0x160] sm:$0xff]
    %v879 = vld [vmem:[%s11 + $0x168] sm:$0xf]
    %v880 = vld [vmem:[%s11 + $0x16c] sm:$0xff]
    %v881 = vld [vmem:[%s11 + $0x174] sm:$0xff]
    %v882 = vld [vmem:[%s11 + $0x17c] sm:$0xff]
    %v883 = vld [vmem:[%s11 + $0x184] sm:$0xf]
    %v884 = vld [vmem:[%s11 + $0x188] sm:$0xff]
    %v885 = vld [vmem:[%s11 + $0x190] sm:$0xff]
    %v886 = vld [vmem:[%s11 + $0x198] sm:$0xff]
    %v887 = vld [vmem:[%s11 + $0x1a0] sm:$0xf]
    %v888 = vld [vmem:[%s11 + $0x1a4] sm:$0xff]
    %v889 = vld [vmem:[%s11 + $0x1ac] sm:$0xff]
    %v890 = vld [vmem:[%s11 + $0x1b4] sm:$0xff]
    %v891 = vld [vmem:[%s11 + $0x1bc] sm:$0xf]
    %v892 = vld [vmem:[%s12] sm:$0x7f]
    %v894 = vperm.slane %v892, 0
    %v895 = vperm.slane %v892, 1
    %v896 = vperm.slane %v892, 2
    %v897 = vperm.slane %v892, 3
    %v898 = vperm.slane %v892, 4
    %v899 = vperm.slane %v892, 5
    %v900 = vperm.slane %v892, 6
    %v972 = vunpack.c.l.b16 %v828
    %v973 = vunpack.c.h.b16 %v828
    %v974 = vunpack.c.l.b16 %v829
    %v975 = vunpack.c.h.b16 %v829
    %v976 = vunpack.c.l.b16 %v830
    %v977 = vunpack.c.h.b16 %v830
    %v978 = vunpack.c.l.b16 %v831
    %v979 = vunpack.c.l.b16 %v832
    %v980 = vunpack.c.h.b16 %v832
    %v981 = vunpack.c.l.b16 %v833
    %v982 = vunpack.c.h.b16 %v833
    %v983 = vunpack.c.l.b16 %v834
    %v984 = vunpack.c.h.b16 %v834
    %v985 = vunpack.c.l.b16 %v835
    %v986 = vunpack.c.l.b16 %v836
    %v987 = vunpack.c.h.b16 %v836
    %v988 = vunpack.c.l.b16 %v837
    %v989 = vunpack.c.h.b16 %v837
    %v990 = vunpack.c.l.b16 %v838
    %v991 = vunpack.c.h.b16 %v838
    %v992 = vunpack.c.l.b16 %v839
    %v993 = vunpack.c.l.b16 %v840
    %v994 = vunpack.c.h.b16 %v840
    %v995 = vunpack.c.l.b16 %v841
    %v996 = vunpack.c.h.b16 %v841
    %v997 = vunpack.c.l.b16 %v842
    %v998 = vunpack.c.h.b16 %v842
    %v999 = vunpack.c.l.b16 %v843
    %v1000 = vunpack.c.l.b16 %v844
    %v1001 = vunpack.c.h.b16 %v844
    %v1002 = vunpack.c.l.b16 %v845
    %v1003 = vunpack.c.h.b16 %v845
    %v1004 = vunpack.c.l.b16 %v846
    %v1005 = vunpack.c.h.b16 %v846
    %v1006 = vunpack.c.l.b16 %v847
    %v1007 = vunpack.c.l.b16 %v848
    %v1008 = vunpack.c.h.b16 %v848
    %v1009 = vunpack.c.l.b16 %v849
    %v1010 = vunpack.c.h.b16 %v849
    %v1011 = vunpack.c.l.b16 %v850
    %v1012 = vunpack.c.h.b16 %v850
    %v1013 = vunpack.c.l.b16 %v851
    %v1014 = vunpack.c.l.b16 %v852
    %v1015 = vunpack.c.h.b16 %v852
    %v1016 = vunpack.c.l.b16 %v853
    %v1017 = vunpack.c.h.b16 %v853
    %v1018 = vunpack.c.l.b16 %v854
    %v1019 = vunpack.c.h.b16 %v854
    %v1020 = vunpack.c.l.b16 %v855
    %v1021 = vunpack.c.l.b16 %v856
    %v1022 = vunpack.c.h.b16 %v856
    %v1023 = vunpack.c.l.b16 %v857
    %v1024 = vunpack.c.h.b16 %v857
    %v1025 = vunpack.c.l.b16 %v858
    %v1026 = vunpack.c.h.b16 %v858
    %v1027 = vunpack.c.l.b16 %v859
    %v1028 = vunpack.c.l.b16 %v860
    %v1029 = vunpack.c.h.b16 %v860
    %v1030 = vunpack.c.l.b16 %v861
    %v1031 = vunpack.c.h.b16 %v861
    %v1032 = vunpack.c.l.b16 %v862
    %v1033 = vunpack.c.h.b16 %v862
    %v1034 = vunpack.c.l.b16 %v863
    %v1035 = vunpack.c.l.b16 %v864
    %v1036 = vunpack.c.h.b16 %v864
    %v1037 = vunpack.c.l.b16 %v865
    %v1038 = vunpack.c.h.b16 %v865
    %v1039 = vunpack.c.l.b16 %v866
    %v1040 = vunpack.c.h.b16 %v866
    %v1041 = vunpack.c.l.b16 %v867
    %v1042 = vunpack.c.l.b16 %v868
    %v1043 = vunpack.c.h.b16 %v868
    %v1044 = vunpack.c.l.b16 %v869
    %v1045 = vunpack.c.h.b16 %v869
    %v1046 = vunpack.c.l.b16 %v870
    %v1047 = vunpack.c.h.b16 %v870
    %v1048 = vunpack.c.l.b16 %v871
    %v1049 = vunpack.c.l.b16 %v872
    %v1050 = vunpack.c.h.b16 %v872
    %v1051 = vunpack.c.l.b16 %v873
    %v1052 = vunpack.c.h.b16 %v873
    %v1053 = vunpack.c.l.b16 %v874
    %v1054 = vunpack.c.h.b16 %v874
    %v1055 = vunpack.c.l.b16 %v875
    %v1056 = vunpack.c.l.b16 %v876
    %v1057 = vunpack.c.h.b16 %v876
    %v1058 = vunpack.c.l.b16 %v877
    %v1059 = vunpack.c.h.b16 %v877
    %v1060 = vunpack.c.l.b16 %v878
    %v1061 = vunpack.c.h.b16 %v878
    %v1062 = vunpack.c.l.b16 %v879
    %v1063 = vunpack.c.l.b16 %v880
    %v1064 = vunpack.c.h.b16 %v880
    %v1065 = vunpack.c.l.b16 %v881
    %v1066 = vunpack.c.h.b16 %v881
    %v1067 = vunpack.c.l.b16 %v882
    %v1068 = vunpack.c.h.b16 %v882
    %v1069 = vunpack.c.l.b16 %v883
    %v1070 = vunpack.c.l.b16 %v884
    %v1071 = vunpack.c.h.b16 %v884
    %v1072 = vunpack.c.l.b16 %v885
    %v1073 = vunpack.c.h.b16 %v885
    %v1074 = vunpack.c.l.b16 %v886
    %v1075 = vunpack.c.h.b16 %v886
    %v1076 = vunpack.c.l.b16 %v887
    %v1077 = vunpack.c.l.b16 %v888
    %v1078 = vunpack.c.h.b16 %v888
    %v1079 = vunpack.c.l.b16 %v889
    %v1080 = vunpack.c.h.b16 %v889
    %v1081 = vunpack.c.l.b16 %v890
    %v1082 = vunpack.c.h.b16 %v890
    %v1083 = vunpack.c.l.b16 %v891
    %v1084 = vpack.c.b16 %v979, %v972
    %v1085 = vpack.c.b16 %v980, %v973
    %v1086 = vpack.c.b16 %v981, %v974
    %v1087 = vpack.c.b16 %v982, %v975
    %v1088 = vpack.c.b16 %v983, %v976
    %v1089 = vpack.c.b16 %v984, %v977
    %v1090 = vpack.c.b16 %v985, %v978
    %v1091 = vpack.c.b16 %v993, %v986
    %v1092 = vpack.c.b16 %v994, %v987
    %v1093 = vpack.c.b16 %v995, %v988
    %v1094 = vpack.c.b16 %v996, %v989
    %v1095 = vpack.c.b16 %v997, %v990
    %v1096 = vpack.c.b16 %v998, %v991
    %v1097 = vpack.c.b16 %v999, %v992
    %v1098 = vpack.c.b16 %v1007, %v1000
    %v1099 = vpack.c.b16 %v1008, %v1001
    %v1100 = vpack.c.b16 %v1009, %v1002
    %v1101 = vpack.c.b16 %v1010, %v1003
    %v1102 = vpack.c.b16 %v1011, %v1004
    %v1103 = vpack.c.b16 %v1012, %v1005
    %v1104 = vpack.c.b16 %v1013, %v1006
    %v1105 = vpack.c.b16 %v1021, %v1014
    %v1106 = vpack.c.b16 %v1022, %v1015
    %v1107 = vpack.c.b16 %v1023, %v1016
    %v1108 = vpack.c.b16 %v1024, %v1017
    %v1109 = vpack.c.b16 %v1025, %v1018
    %v1110 = vpack.c.b16 %v1026, %v1019
    %v1111 = vpack.c.b16 %v1027, %v1020
    %v1112 = vpack.c.b16 %v1035, %v1028
    %v1113 = vpack.c.b16 %v1036, %v1029
    %v1114 = vpack.c.b16 %v1037, %v1030
    %v1115 = vpack.c.b16 %v1038, %v1031
    %v1116 = vpack.c.b16 %v1039, %v1032
    %v1117 = vpack.c.b16 %v1040, %v1033
    %v1118 = vpack.c.b16 %v1041, %v1034
    %v1119 = vpack.c.b16 %v1049, %v1042
    %v1120 = vpack.c.b16 %v1050, %v1043
    %v1121 = vpack.c.b16 %v1051, %v1044
    %v1122 = vpack.c.b16 %v1052, %v1045
    %v1123 = vpack.c.b16 %v1053, %v1046
    %v1124 = vpack.c.b16 %v1054, %v1047
    %v1125 = vpack.c.b16 %v1055, %v1048
    %v1126 = vpack.c.b16 %v1063, %v1056
    %v1127 = vpack.c.b16 %v1064, %v1057
    %v1128 = vpack.c.b16 %v1065, %v1058
    %v1129 = vpack.c.b16 %v1066, %v1059
    %v1130 = vpack.c.b16 %v1067, %v1060
    %v1131 = vpack.c.b16 %v1068, %v1061
    %v1132 = vpack.c.b16 %v1069, %v1062
    %v1133 = vpack.c.b16 %v1077, %v1070
    %v1134 = vpack.c.b16 %v1078, %v1071
    %v1135 = vpack.c.b16 %v1079, %v1072
    %v1136 = vpack.c.b16 %v1080, %v1073
    %v1137 = vpack.c.b16 %v1081, %v1074
    %v1138 = vpack.c.b16 %v1082, %v1075
    %v1139 = vpack.c.b16 %v1083, %v1076
    %1196 = vmatpush.bf16.msra.mxu0 %v1133
    %1197 = vmatpush.bf16.msra.mxu0 %v1126
    %1198 = vmatpush.bf16.msra.mxu0 %v1119
    %1199 = vmatpush.bf16.msra.mxu0 %v1112
    %1200 = vmatpush.bf16.msra.mxu0 %v1105
    %1201 = vmatpush.bf16.msra.mxu0 %v1098
    %1202 = vmatpush.bf16.msra.mxu0 %v1091
    %1203 = vmatpush.bf16.msra.mxu0 %v1084
    %1204 = vmatmul.bf16.gmra.mxu0 %v827
    %v1205 = vpop.f32.mrf.mxu0
    %v1206 = vadd.f32 %v894, %v1205
    %v1207 = vpop.f32.mrf.mxu0
    %1208 = vdwg.mxu0
    %1209 = vmatpush.bf16.msra.mxu0 %v1134
    %1210 = vmatpush.bf16.msra.mxu0 %v1127
    %1211 = vmatpush.bf16.msra.mxu0 %v1120
    %1212 = vmatpush.bf16.msra.mxu0 %v1113
    %1213 = vmatpush.bf16.msra.mxu0 %v1106
    %1214 = vmatpush.bf16.msra.mxu0 %v1099
    %1215 = vmatpush.bf16.msra.mxu0 %v1092
    %1216 = vmatpush.bf16.msra.mxu0 %v1085
    %1217 = vmatmul.bf16.gmra.mxu0 %v827
    %v1218 = vpop.f32.mrf.mxu0
    %v1219 = vadd.f32 %v895, %v1218
    %v1220 = vpop.f32.mrf.mxu0
    %1221 = vdwg.mxu0
    %1222 = vmatpush.bf16.msra.mxu0 %v1135
    %1223 = vmatpush.bf16.msra.mxu0 %v1128
    %1224 = vmatpush.bf16.msra.mxu0 %v1121
    %1225 = vmatpush.bf16.msra.mxu0 %v1114
    %1226 = vmatpush.bf16.msra.mxu0 %v1107
    %1227 = vmatpush.bf16.msra.mxu0 %v1100
    %1228 = vmatpush.bf16.msra.mxu0 %v1093
    %1229 = vmatpush.bf16.msra.mxu0 %v1086
    %1230 = vmatmul.bf16.gmra.mxu0 %v827
    %v1231 = vpop.f32.mrf.mxu0
    %v1232 = vadd.f32 %v896, %v1231
    %v1233 = vpop.f32.mrf.mxu0
    %1234 = vdwg.mxu0
    %1235 = vmatpush.bf16.msra.mxu0 %v1136
    %1236 = vmatpush.bf16.msra.mxu0 %v1129
    %1237 = vmatpush.bf16.msra.mxu0 %v1122
    %1238 = vmatpush.bf16.msra.mxu0 %v1115
    %1239 = vmatpush.bf16.msra.mxu0 %v1108
    %1240 = vmatpush.bf16.msra.mxu0 %v1101
    %1241 = vmatpush.bf16.msra.mxu0 %v1094
    %1242 = vmatpush.bf16.msra.mxu0 %v1087
    %1243 = vmatmul.bf16.gmra.mxu0 %v827
    %v1244 = vpop.f32.mrf.mxu0
    %v1245 = vadd.f32 %v897, %v1244
    %v1246 = vpop.f32.mrf.mxu0
    %1247 = vdwg.mxu0
    %1248 = vmatpush.bf16.msra.mxu0 %v1137
    %1249 = vmatpush.bf16.msra.mxu0 %v1130
    %1250 = vmatpush.bf16.msra.mxu0 %v1123
    %1251 = vmatpush.bf16.msra.mxu0 %v1116
    %1252 = vmatpush.bf16.msra.mxu0 %v1109
    %1253 = vmatpush.bf16.msra.mxu0 %v1102
    %1254 = vmatpush.bf16.msra.mxu0 %v1095
    %1255 = vmatpush.bf16.msra.mxu0 %v1088
    %1256 = vmatmul.bf16.gmra.mxu0 %v827
    %v1257 = vpop.f32.mrf.mxu0
    %v1258 = vadd.f32 %v898, %v1257
    %v1259 = vpop.f32.mrf.mxu0
    %1260 = vdwg.mxu0
    %1261 = vmatpush.bf16.msra.mxu0 %v1138
    %1262 = vmatpush.bf16.msra.mxu0 %v1131
    %1263 = vmatpush.bf16.msra.mxu0 %v1124
    %1264 = vmatpush.bf16.msra.mxu0 %v1117
    %1265 = vmatpush.bf16.msra.mxu0 %v1110
    %1266 = vmatpush.bf16.msra.mxu0 %v1103
    %1267 = vmatpush.bf16.msra.mxu0 %v1096
    %1268 = vmatpush.bf16.msra.mxu0 %v1089
    %1269 = vmatmul.bf16.gmra.mxu0 %v827
    %v1270 = vpop.f32.mrf.mxu0
    %v1271 = vadd.f32 %v899, %v1270
    %v1272 = vpop.f32.mrf.mxu0
    %1273 = vdwg.mxu0
    %1274 = vmatpush.bf16.msra.mxu0 %v1139
    %1275 = vmatpush.bf16.msra.mxu0 %v1132
    %1276 = vmatpush.bf16.msra.mxu0 %v1125
    %1277 = vmatpush.bf16.msra.mxu0 %v1118
    %1278 = vmatpush.bf16.msra.mxu0 %v1111
    %1279 = vmatpush.bf16.msra.mxu0 %v1104
    %1280 = vmatpush.bf16.msra.mxu0 %v1097
    %1281 = vmatpush.bf16.msra.mxu0 %v1090
    %1282 = vmatmul.bf16.gmra.mxu0 %v827
    %v1283 = vpop.f32.mrf.mxu0
    %v1284 = vadd.f32 %v900, %v1283
    %v1285 = vpop.f32.mrf.mxu0
    %1286 = vdwg.mxu0
    %v1287 = vpack.c.bf16 %v1219, %v1206
    %v1288 = vpack.c.bf16 %v1245, %v1232
    %v1289 = vpack.c.bf16 %v1271, %v1258
    %v1290 = vpack.c.bf16 %v1284, %v1284
    %v1291 = vunpack.c.l.bf16 %v1287
    %v1292 = vunpack.c.h.bf16 %v1287
    %v1293 = vunpack.c.l.bf16 %v1288
    %v1294 = vunpack.c.h.bf16 %v1288
    %v1295 = vunpack.c.l.bf16 %v1289
    %v1296 = vunpack.c.h.bf16 %v1289
    %v1297 = vunpack.c.l.bf16 %v1290
    %v1298 = vtanh.pop %v1291
    %v1299 = vtanh.pop %v1292
    %v1300 = vtanh.pop %v1293
    %v1301 = vtanh.pop %v1294
    %v1302 = vtanh.pop %v1295
    %v1303 = vtanh.pop %v1296
    %v1304 = vtanh.pop %v1297
    %v1305 = vpack.c.bf16 %v1299, %v1298
    %v1306 = vpack.c.bf16 %v1301, %v1300
    %v1307 = vpack.c.bf16 %v1303, %v1302
    %v1308 = vpack.c.bf16 %v1304, %v1304
    %1309 = vst [vmem:[#allocation2] sm:$0xff] %v1305
    %1310 = vst [vmem:[#allocation2 + $0x8] sm:$0xff] %v1306
    %1311 = vst [vmem:[#allocation2 + $0x10] sm:$0xff] %v1307
    %vm1312 = vcmask 125952
    %1313 = vst.msk [vmem:[#allocation2 + $0x18] sm:$0xf] %vm1312, %v1308
    // Predicated region
    $region54: #{tpu_custom_call.1} parent=1 // pred_check
      _
    $region55: #{tpu_custom_call.1} parent=1 // pred_check_branch
      %1315 = sbr.rel (0) target = $region57
    $region56: #{tpu_custom_call.1} parent=1 // pred_region
      %1317 = vsyncadd [#allocation3], 0
      %s1319 = sshll.u32 [#allocation2], 4
      %s1320 = int_to_ptr.vmem [resolvable:$true] %s1319
      %s1321 = sshll.u32 %s13, 4
      %s1322 = int_to_ptr.hbm [resolvable:$true] %s1321
      %1324 = dma.vmem_to_hbm [thread:$0]  %s1320, 448, %s1322, [#allocation3]
    $region57: #{tpu_custom_call.1} parent=1 // pred_fallthru
      _
    // Predicated region
    $region58: #{tpu_custom_call.1} parent=1 // pred_check
      _
    $region59: #{tpu_custom_call.1} parent=1 // pred_check_branch
      %1326 = sbr.rel (0) target = $region61
    $region60: #{tpu_custom_call.1} parent=1 // pred_region
      %1328 = dma.done [#allocation3], 448
    $region61: #{tpu_custom_call.1} parent=1 // pred_fallthru
      _
    %1329 = vsyncpa [#allocation3], 1

</llo_original>
